<compile_context>
chip_gen: v7x
topology: tpu7x:2x2x1
jax: 0.10.0
libtpu: 0.0.40
codegen_flags: <defaults>
</compile_context>

<pallas_src>
import math
import jax
import jax.numpy as jnp
from jax.experimental import pallas as pl
from jax.experimental.pallas import tpu as pltpu

BN_EPS = 1e-5
PAD = 128  # lane-dense feature width (out_dim / molvec_dim / in_dim all <= 128)


def encoder_kernel(x_ref, a_ref, w_ref, b_ref, xout_ref, mol_ref):
    """One batch tile (TB graphs) per grid step.

    x_ref    : (TB*N, PAD)   one-hot node features, zero-padded to 128 lanes
    a_ref    : (TB, N, N)    adjacency matrices
    w_ref    : (6*PAD, 2*PAD) packed weight slab:
                 rows   0:128 -> [w10 | ws0] fused (256 wide)
                 rows 128:256 -> w11  (cols 0:128)
                 rows 256:384 -> wr
                 rows 384:512 -> wf1
                 rows 512:640 -> wf2
                 rows 640:768 -> wf3
    b_ref    : (8, PAD)      bias rows: b10, b11, br, bf1, bf2, bf3
    xout_ref : (TB*N, PAD)   node features after both ResBlocks (cols 0:32 real)
    mol_ref  : (TB, PAD)     molecule vectors (cols 0:32 real)
    """
    bn = 1.0 / jnp.sqrt(1.0 + BN_EPS)  # eval BatchNorm1d with default running stats
    TB, N, _ = a_ref.shape

    X = x_ref[...]              # (TB*N, PAD)
    A = a_ref[...]              # (TB, N, N)

    # Static, tile-aligned slices of the packed weight slab.
    W0  = w_ref[0 * PAD:1 * PAD, :]            # (128, 256) fused [w10 | ws0]
    W11 = w_ref[1 * PAD:2 * PAD, 0:PAD]
    WR  = w_ref[2 * PAD:3 * PAD, 0:PAD]
    WF1 = w_ref[3 * PAD:4 * PAD, 0:PAD]
    WF2 = w_ref[4 * PAD:5 * PAD, 0:PAD]
    WF3 = w_ref[5 * PAD:6 * PAD, 0:PAD]

    Bs = b_ref[...]
    b10, b11, br = Bs[0:1, :], Bs[1:2, :], Bs[2:3, :]
    bf1, bf2, bf3 = Bs[3:4, :], Bs[4:5, :], Bs[5:6, :]

    def spmm(h):
        """Per-graph A @ h; static unroll over the (small) batch tile."""
        parts = []
        for b in range(TB):
            hb = h[b * N:(b + 1) * N, :]                       # (N, PAD), tile-aligned
            parts.append(jnp.dot(A[b], hb, preferred_element_type=jnp.float32))
        return jnp.concatenate(parts, axis=0)                  # (TB*N, PAD)

    # ---------- ResBlock 0 (sc_type='sc', in_dim -> out_dim) ----------
    h0 = jnp.dot(X, W0, preferred_element_type=jnp.float32)    # fused main + shortcut
    h = jnp.maximum(h0[:, 0:PAD] + b10, 0.0)                   # act(fc(X))
    sc = h0[:, PAD:2 * PAD]                                    # shortcut(X), no bias
    h = spmm(h)                                                # A @ x
    h = jnp.maximum(h * bn, 0.0)                               # act(bn1(x))
    x0 = jnp.maximum((h + sc) * bn, 0.0)                       # act(bn2(x + sc)); dropout=id

    # ---------- ResBlock 1 (out_dim -> out_dim, identity shortcut) ----------
    h = jnp.maximum(jnp.dot(x0, W11, preferred_element_type=jnp.float32) + b11, 0.0)
    h = spmm(h)
    h = jnp.maximum(h * bn, 0.0)
    x1 = jnp.maximum((h + x0) * bn, 0.0)
    xout_ref[...] = x1                                         # lane-dense 128-wide store

    # ---------- Readout: Linear(out_dim, molvec_dim) + mean over nodes ----------
    m = jnp.dot(x1, WR, preferred_element_type=jnp.float32) + br   # (TB*N, PAD)
    mol_rows = [jnp.mean(m[b * N:(b + 1) * N, :], axis=0, keepdims=True)
                for b in range(TB)]
    mol = jnp.concatenate(mol_rows, axis=0)                    # (TB, PAD)

    # ---------- Head MLP (batched over TB): dropout(bn(act(fc))) x2, then fc3 ----------
    mol = jnp.maximum(jnp.dot(mol, WF1, preferred_element_type=jnp.float32) + bf1, 0.0) * bn
    mol = jnp.maximum(jnp.dot(mol, WF2, preferred_element_type=jnp.float32) + bf2, 0.0) * bn
    mol = jnp.dot(mol, WF3, preferred_element_type=jnp.float32) + bf3
    mol_ref[...] = mol                                         # lane-dense store


def _pad_to(w, rows, cols):
    out = jnp.zeros((rows, cols), jnp.float32)
    return out.at[:w.shape[0], :w.shape[1]].set(w.astype(jnp.float32))


def pack_params(params):
    """Pack 13 parameter arrays into one weight slab + one bias slab."""
    w0 = jnp.concatenate([_pad_to(params["w10"], PAD, PAD),
                          _pad_to(params["ws0"], PAD, PAD)], axis=1)     # (128, 256)
    rest = []
    for k in ("w11", "wr", "wf1", "wf2", "wf3"):
        m = _pad_to(params[k], PAD, PAD)
        rest.append(jnp.concatenate([m, jnp.zeros((PAD, PAD), jnp.float32)], axis=1))
    wslab = jnp.concatenate([w0] + rest, axis=0)                         # (768, 256)

    bslab = jnp.zeros((8, PAD), jnp.float32)
    for i, k in enumerate(("b10", "b11", "br", "bf1", "bf2", "bf3")):
        b = params[k].reshape(-1).astype(jnp.float32)
        bslab = bslab.at[i, :b.shape[0]].set(b)
    return wslab, bslab


def encoder_forward(X_onehot, A, params, batch_tile=None):
    B, N, in_dim = X_onehot.shape
    out_dim = params["w10"].shape[1]
    molvec_dim = params["wr"].shape[1]
    assert in_dim <= PAD and out_dim <= PAD and molvec_dim <= PAD

    TB = batch_tile or (B if B <= 8 else 8)   # whole batch per step at small B
    assert B % TB == 0 and (TB == B or TB % 8 == 0)
    n_tiles = B // TB

    wslab, bslab = pack_params(params)

    # Lane-pad node features and fold the batch into the row (sublane) axis.
    X_flat = jnp.zeros((B * N, PAD), jnp.float32).at[:, :in_dim].set(
        X_onehot.reshape(B * N, in_dim).astype(jnp.float32))
    A = A.astype(jnp.float32)

    x_slab, mol_slab = pl.pallas_call(
        encoder_kernel,
        out_shape=(jax.ShapeDtypeStruct((B * N, PAD), jnp.float32),
                   jax.ShapeDtypeStruct((B, PAD), jnp.float32)),
        grid_spec=pltpu.PrefetchScalarGridSpec(
            num_scalar_prefetch=0,
            grid=(n_tiles,),
            in_specs=[
                pl.BlockSpec((TB * N, PAD), lambda i: (i, 0)),   # node features
                pl.BlockSpec((TB, N, N), lambda i: (i, 0, 0)),   # adjacency
                pl.BlockSpec(wslab.shape, lambda i: (0, 0)),     # packed weights (grid-constant)
                pl.BlockSpec(bslab.shape, lambda i: (0, 0)),     # packed biases (grid-constant)
            ],
            out_specs=[
                pl.BlockSpec((TB * N, PAD), lambda i: (i, 0)),
                pl.BlockSpec((TB, PAD), lambda i: (i, 0)),
            ],
        ),
        compiler_params=pltpu.CompilerParams(
            dimension_semantics=("parallel",)),
    )(X_flat, A, wslab, bslab)

    x_out = x_slab[:, :out_dim].reshape(B, N, out_dim)
    molvec = mol_slab[:, :molvec_dim]
    return x_out, A, molvec


def reference(X, A, p):
    """Pure-JAX reference of the same forward pass (for validation)."""
    bn = 1.0 / jnp.sqrt(1.0 + BN_EPS)
    h = jnp.maximum(X @ p["w10"] + p["b10"], 0.0)
    h = jnp.einsum("bij,bjd->bid", A, h)
    h = jnp.maximum(h * bn, 0.0)
    h = h + X @ p["ws0"]
    x0 = jnp.maximum(h * bn, 0.0)
    h = jnp.maximum(x0 @ p["w11"] + p["b11"], 0.0)
    h = jnp.einsum("bij,bjd->bid", A, h)
    h = jnp.maximum(h * bn, 0.0)
    h = h + x0
    x1 = jnp.maximum(h * bn, 0.0)
    m = x1 @ p["wr"] + p["br"]
    mol = jnp.mean(m, axis=1)
    mol = jnp.maximum(mol @ p["wf1"] + p["bf1"], 0.0) * bn
    mol = jnp.maximum(mol @ p["wf2"] + p["bf2"], 0.0) * bn
    mol = mol @ p["wf3"] + p["bf3"]
    return x1, mol


def xavier_normal(key, fan_in, fan_out):
    std = math.sqrt(2.0 / (fan_in + fan_out))
    return std * jax.random.normal(key, (fan_in, fan_out), dtype=jnp.float32)


if __name__ == "__main__":
    # --- synthetic args ---
    B, N = 2, 8
    out_dim, molvec_dim = 32, 32
    vocab_sizes = [10, 6, 5, 6, 2]                    # vocab/degree/numH/valence/isarom
    vocab_plus = [v + 1 for v in vocab_sizes]         # Encoder adds +1 per table
    in_dim = sum(vocab_plus)                          # one-hot identity embeddings -> 34

    key = jax.random.PRNGKey(0)
    keys = jax.random.split(key, 20)

    # --- parameters (stored pre-transposed: (in, out), so kernel does x @ W) ---
    params = {
        "w10": xavier_normal(keys[0], in_dim, out_dim),
        "b10": jnp.zeros((1, out_dim), jnp.float32),
        "ws0": xavier_normal(keys[1], in_dim, out_dim),       # shortcut (no bias)
        "w11": xavier_normal(keys[2], out_dim, out_dim),
        "b11": jnp.zeros((1, out_dim), jnp.float32),
        "wr":  xavier_normal(keys[3], out_dim, molvec_dim),
        "br":  0.01 * jax.random.normal(keys[4], (1, molvec_dim), jnp.float32),
        "wf1": xavier_normal(keys[5], molvec_dim, molvec_dim),
        "bf1": 0.01 * jax.random.normal(keys[6], (1, molvec_dim), jnp.float32),
        "wf2": xavier_normal(keys[7], molvec_dim, molvec_dim),
        "bf2": 0.01 * jax.random.normal(keys[8], (1, molvec_dim), jnp.float32),
        "wf3": xavier_normal(keys[9], molvec_dim, molvec_dim),
        "bf3": 0.01 * jax.random.normal(keys[10], (1, molvec_dim), jnp.float32),
    }

    # --- inputs ---
    cols = [jax.random.randint(keys[11 + i], (B, N), 0, vocab_plus[i]) for i in range(5)]
    input_X = jnp.stack(cols, axis=-1)                        # integer features (B, N, 5)

    a_raw = (jax.random.uniform(keys[17], (B, N, N)) < 0.4).astype(jnp.float32)
    A = jnp.clip(a_raw + jnp.transpose(a_raw, (0, 2, 1)) + jnp.eye(N)[None], 0.0, 1.0)

    # --- glue: identity-embedding lookup == one-hot concat (frozen emb tables) ---
    X_onehot = jnp.concatenate(
        [jax.nn.one_hot(input_X[:, :, i], vocab_plus[i], dtype=jnp.float32)
         for i in range(5)], axis=-1)

    # --- run Pallas kernel ---
    x_out, A_out, molvec = encoder_forward(X_onehot, A, params)
    jax.block_until_ready((x_out, A_out, molvec))

    # --- validate against pure-JAX reference ---
    x_ref, mol_ref = reference(X_onehot, A, params)
    assert jnp.allclose(x_out, x_ref, rtol=1e-3, atol=1e-3)
    assert jnp.allclose(molvec, mol_ref, rtol=1e-3, atol=1e-3)

    # TODO(synk): training-mode Dropout/BatchNorm statistics, the attention
    # variant (use_attn=True) and the 'gsc' gated shortcut are not exercised in
    # this synthetic config; padded-graph node masking (for the mean readout)
    # and bf16 operand casting for large-N deployments are also left out.
    print("KERNEL_OK")
</pallas_src>

<mosaic_0001>
module attributes {stable_mosaic.version = 11 : i64} {
  func.func @encoder_kernel(%arg0: i32, %arg1: memref<16x128xf32, #tpu.memory_space<vmem>>, %arg2: memref<2x8x8xf32, #tpu.memory_space<vmem>>, %arg3: memref<768x256xf32, #tpu.memory_space<vmem>>, %arg4: memref<8x128xf32, #tpu.memory_space<vmem>>, %arg5: memref<16x128xf32, #tpu.memory_space<vmem>>, %arg6: memref<2x128xf32, #tpu.memory_space<vmem>>) attributes {dimension_semantics = [#tpu.dimension_semantics<parallel>], iteration_bounds = array<i64: 1>, scalar_prefetch = 0 : i64, scratch_operands = 0 : i64, tpu.core_type = #tpu.core_type<tc>, window_params = [{transform_indices = @transform_0, window_bounds = array<i64: 16, 128>}, {transform_indices = @transform_1, window_bounds = array<i64: 2, 8, 8>}, {pipeline_mode = #tpu.pipeline_mode<synchronous>, transform_indices = @transform_2, window_bounds = array<i64: 768, 256>}, {pipeline_mode = #tpu.pipeline_mode<synchronous>, transform_indices = @transform_3, window_bounds = array<i64: 8, 128>}, {transform_indices = @transform_4, window_bounds = array<i64: 16, 128>}, {transform_indices = @transform_5, window_bounds = array<i64: 2, 128>}]} {
    %cst = arith.constant 1.000010e+00 : f32
    %0 = math.sqrt %cst : f32
    %cst_0 = arith.constant 1.000000e+00 : f32
    %1 = arith.divf %cst_0, %0 : f32
    %c0 = arith.constant 0 : index
    %c0_1 = arith.constant 0 : index
    %2 = vector.load %arg1[%c0, %c0_1] : memref<16x128xf32, #tpu.memory_space<vmem>>, vector<16x128xf32>
    %c0_2 = arith.constant 0 : index
    %c0_3 = arith.constant 0 : index
    %c0_4 = arith.constant 0 : index
    %3 = vector.load %arg2[%c0_2, %c0_3, %c0_4] : memref<2x8x8xf32, #tpu.memory_space<vmem>>, vector<2x8x8xf32>
    %c0_5 = arith.constant 0 : index
    %c0_6 = arith.constant 0 : index
    %4 = vector.load %arg3[%c0_5, %c0_6] : memref<768x256xf32, #tpu.memory_space<vmem>>, vector<128x256xf32>
    %c128 = arith.constant 128 : index
    %c0_7 = arith.constant 0 : index
    %5 = vector.load %arg3[%c128, %c0_7] : memref<768x256xf32, #tpu.memory_space<vmem>>, vector<128x128xf32>
    %c256 = arith.constant 256 : index
    %c0_8 = arith.constant 0 : index
    %6 = vector.load %arg3[%c256, %c0_8] : memref<768x256xf32, #tpu.memory_space<vmem>>, vector<128x128xf32>
    %c384 = arith.constant 384 : index
    %c0_9 = arith.constant 0 : index
    %7 = vector.load %arg3[%c384, %c0_9] : memref<768x256xf32, #tpu.memory_space<vmem>>, vector<128x128xf32>
    %c512 = arith.constant 512 : index
    %c0_10 = arith.constant 0 : index
    %8 = vector.load %arg3[%c512, %c0_10] : memref<768x256xf32, #tpu.memory_space<vmem>>, vector<128x128xf32>
    %c640 = arith.constant 640 : index
    %c0_11 = arith.constant 0 : index
    %9 = vector.load %arg3[%c640, %c0_11] : memref<768x256xf32, #tpu.memory_space<vmem>>, vector<128x128xf32>
    %c0_12 = arith.constant 0 : index
    %c0_13 = arith.constant 0 : index
    %10 = vector.load %arg4[%c0_12, %c0_13] : memref<8x128xf32, #tpu.memory_space<vmem>>, vector<8x128xf32>
    %11 = vector.extract_strided_slice %10 {offsets = [0, 0], sizes = [1, 128], strides = [1, 1]} : vector<8x128xf32> to vector<1x128xf32>
    %12 = vector.extract_strided_slice %10 {offsets = [1, 0], sizes = [1, 128], strides = [1, 1]} : vector<8x128xf32> to vector<1x128xf32>
    %13 = vector.extract_strided_slice %10 {offsets = [2, 0], sizes = [1, 128], strides = [1, 1]} : vector<8x128xf32> to vector<1x128xf32>
    %14 = vector.extract_strided_slice %10 {offsets = [3, 0], sizes = [1, 128], strides = [1, 1]} : vector<8x128xf32> to vector<1x128xf32>
    %15 = vector.extract_strided_slice %10 {offsets = [4, 0], sizes = [1, 128], strides = [1, 1]} : vector<8x128xf32> to vector<1x128xf32>
    %16 = vector.extract_strided_slice %10 {offsets = [5, 0], sizes = [1, 128], strides = [1, 1]} : vector<8x128xf32> to vector<1x128xf32>
    %cst_14 = arith.constant dense<0.000000e+00> : vector<16x256xf32>
    %17 = tpu.matmul %2, %4, %cst_14 {dimension_numbers = #tpu.dot_dimension_numbers<[1], [0], [0], [1], [0, 0, 1, 1], [], []>} : vector<16x128xf32>, vector<128x256xf32>, vector<16x256xf32> -> vector<16x256xf32>
    %18 = vector.extract_strided_slice %17 {offsets = [0, 0], sizes = [16, 128], strides = [1, 1]} : vector<16x256xf32> to vector<16x128xf32>
    %19 = vector.broadcast %11 : vector<1x128xf32> to vector<16x128xf32>
    %20 = arith.addf %18, %19 : vector<16x128xf32>
    %cst_15 = arith.constant 0.000000e+00 : f32
    %21 = vector.broadcast %cst_15 : f32 to vector<16x128xf32>
    %22 = arith.maximumf %20, %21 : vector<16x128xf32>
    %23 = vector.extract_strided_slice %17 {offsets = [0, 128], sizes = [16, 128], strides = [1, 1]} : vector<16x256xf32> to vector<16x128xf32>
    %24 = vector.extract_strided_slice %22 {offsets = [0, 0], sizes = [8, 128], strides = [1, 1]} : vector<16x128xf32> to vector<8x128xf32>
    %25 = vector.extract_strided_slice %3 {offsets = [0, 0, 0], sizes = [1, 8, 8], strides = [1, 1, 1]} : vector<2x8x8xf32> to vector<1x8x8xf32>
    %26 = vector.shape_cast %25 : vector<1x8x8xf32> to vector<8x8xf32>
    %cst_16 = arith.constant dense<0.000000e+00> : vector<8x128xf32>
    %27 = tpu.matmul %26, %24, %cst_16 {dimension_numbers = #tpu.dot_dimension_numbers<[1], [0], [0], [1], [0, 0, 1, 1], [], []>} : vector<8x8xf32>, vector<8x128xf32>, vector<8x128xf32> -> vector<8x128xf32>
    %28 = vector.extract_strided_slice %22 {offsets = [8, 0], sizes = [8, 128], strides = [1, 1]} : vector<16x128xf32> to vector<8x128xf32>
    %29 = vector.extract_strided_slice %3 {offsets = [1, 0, 0], sizes = [1, 8, 8], strides = [1, 1, 1]} : vector<2x8x8xf32> to vector<1x8x8xf32>
    %30 = vector.shape_cast %29 : vector<1x8x8xf32> to vector<8x8xf32>
    %cst_17 = arith.constant dense<0.000000e+00> : vector<8x128xf32>
    %31 = tpu.matmul %30, %28, %cst_17 {dimension_numbers = #tpu.dot_dimension_numbers<[1], [0], [0], [1], [0, 0, 1, 1], [], []>} : vector<8x8xf32>, vector<8x128xf32>, vector<8x128xf32> -> vector<8x128xf32>
    %32 = tpu.concatenate %27, %31 in 0 : vector<8x128xf32>, vector<8x128xf32> -> vector<16x128xf32>
    %33 = vector.broadcast %1 : f32 to vector<16x128xf32>
    %34 = arith.mulf %32, %33 : vector<16x128xf32>
    %cst_18 = arith.constant 0.000000e+00 : f32
    %35 = vector.broadcast %cst_18 : f32 to vector<16x128xf32>
    %36 = arith.maximumf %34, %35 : vector<16x128xf32>
    %37 = arith.addf %36, %23 : vector<16x128xf32>
    %38 = vector.broadcast %1 : f32 to vector<16x128xf32>
    %39 = arith.mulf %37, %38 : vector<16x128xf32>
    %cst_19 = arith.constant 0.000000e+00 : f32
    %40 = vector.broadcast %cst_19 : f32 to vector<16x128xf32>
    %41 = arith.maximumf %39, %40 : vector<16x128xf32>
    %cst_20 = arith.constant dense<0.000000e+00> : vector<16x128xf32>
    %42 = tpu.matmul %41, %5, %cst_20 {dimension_numbers = #tpu.dot_dimension_numbers<[1], [0], [0], [1], [0, 0, 1, 1], [], []>} : vector<16x128xf32>, vector<128x128xf32>, vector<16x128xf32> -> vector<16x128xf32>
    %43 = vector.broadcast %12 : vector<1x128xf32> to vector<16x128xf32>
    %44 = arith.addf %42, %43 : vector<16x128xf32>
    %cst_21 = arith.constant 0.000000e+00 : f32
    %45 = vector.broadcast %cst_21 : f32 to vector<16x128xf32>
    %46 = arith.maximumf %44, %45 : vector<16x128xf32>
    %47 = vector.extract_strided_slice %46 {offsets = [0, 0], sizes = [8, 128], strides = [1, 1]} : vector<16x128xf32> to vector<8x128xf32>
    %48 = vector.extract_strided_slice %3 {offsets = [0, 0, 0], sizes = [1, 8, 8], strides = [1, 1, 1]} : vector<2x8x8xf32> to vector<1x8x8xf32>
    %49 = vector.shape_cast %48 : vector<1x8x8xf32> to vector<8x8xf32>
    %cst_22 = arith.constant dense<0.000000e+00> : vector<8x128xf32>
    %50 = tpu.matmul %49, %47, %cst_22 {dimension_numbers = #tpu.dot_dimension_numbers<[1], [0], [0], [1], [0, 0, 1, 1], [], []>} : vector<8x8xf32>, vector<8x128xf32>, vector<8x128xf32> -> vector<8x128xf32>
    %51 = vector.extract_strided_slice %46 {offsets = [8, 0], sizes = [8, 128], strides = [1, 1]} : vector<16x128xf32> to vector<8x128xf32>
    %52 = vector.extract_strided_slice %3 {offsets = [1, 0, 0], sizes = [1, 8, 8], strides = [1, 1, 1]} : vector<2x8x8xf32> to vector<1x8x8xf32>
    %53 = vector.shape_cast %52 : vector<1x8x8xf32> to vector<8x8xf32>
    %cst_23 = arith.constant dense<0.000000e+00> : vector<8x128xf32>
    %54 = tpu.matmul %53, %51, %cst_23 {dimension_numbers = #tpu.dot_dimension_numbers<[1], [0], [0], [1], [0, 0, 1, 1], [], []>} : vector<8x8xf32>, vector<8x128xf32>, vector<8x128xf32> -> vector<8x128xf32>
    %55 = tpu.concatenate %50, %54 in 0 : vector<8x128xf32>, vector<8x128xf32> -> vector<16x128xf32>
    %56 = vector.broadcast %1 : f32 to vector<16x128xf32>
    %57 = arith.mulf %55, %56 : vector<16x128xf32>
    %cst_24 = arith.constant 0.000000e+00 : f32
    %58 = vector.broadcast %cst_24 : f32 to vector<16x128xf32>
    %59 = arith.maximumf %57, %58 : vector<16x128xf32>
    %60 = arith.addf %59, %41 : vector<16x128xf32>
    %61 = vector.broadcast %1 : f32 to vector<16x128xf32>
    %62 = arith.mulf %60, %61 : vector<16x128xf32>
    %cst_25 = arith.constant 0.000000e+00 : f32
    %63 = vector.broadcast %cst_25 : f32 to vector<16x128xf32>
    %64 = arith.maximumf %62, %63 : vector<16x128xf32>
    %c0_26 = arith.constant 0 : index
    %c0_27 = arith.constant 0 : index
    %65 = vector.load %arg5[%c0_26, %c0_27] : memref<16x128xf32, #tpu.memory_space<vmem>>, vector<16x128xf32>
    tpu.vector_store %arg5[%c0_26, %c0_27], %64 {strides = array<i32>} : memref<16x128xf32, #tpu.memory_space<vmem>>, vector<16x128xf32>,
    %cst_28 = arith.constant dense<0.000000e+00> : vector<16x128xf32>
    %66 = tpu.matmul %64, %6, %cst_28 {dimension_numbers = #tpu.dot_dimension_numbers<[1], [0], [0], [1], [0, 0, 1, 1], [], []>} : vector<16x128xf32>, vector<128x128xf32>, vector<16x128xf32> -> vector<16x128xf32>
    %67 = vector.broadcast %13 : vector<1x128xf32> to vector<16x128xf32>
    %68 = arith.addf %66, %67 : vector<16x128xf32>
    %69 = vector.extract_strided_slice %68 {offsets = [0, 0], sizes = [8, 128], strides = [1, 1]} : vector<16x128xf32> to vector<8x128xf32>
    %cst_29 = arith.constant dense<0.000000e+00> : vector<128xf32>
    %70 = vector.multi_reduction <add>, %69, %cst_29 [0] : vector<8x128xf32> to vector<128xf32>
    %71 = vector.shape_cast %70 : vector<128xf32> to vector<1x128xf32>
    %cst_30 = arith.constant 8.000000e+00 : f32
    %72 = vector.broadcast %cst_30 : f32 to vector<1x128xf32>
    %73 = arith.divf %71, %72 : vector<1x128xf32>
    %74 = vector.extract_strided_slice %68 {offsets = [8, 0], sizes = [8, 128], strides = [1, 1]} : vector<16x128xf32> to vector<8x128xf32>
    %cst_31 = arith.constant dense<0.000000e+00> : vector<128xf32>
    %75 = vector.multi_reduction <add>, %74, %cst_31 [0] : vector<8x128xf32> to vector<128xf32>
    %76 = vector.shape_cast %75 : vector<128xf32> to vector<1x128xf32>
    %cst_32 = arith.constant 8.000000e+00 : f32
    %77 = vector.broadcast %cst_32 : f32 to vector<1x128xf32>
    %78 = arith.divf %76, %77 : vector<1x128xf32>
    %79 = tpu.concatenate %73, %78 in 0 : vector<1x128xf32>, vector<1x128xf32> -> vector<2x128xf32>
    %cst_33 = arith.constant dense<0.000000e+00> : vector<2x128xf32>
    %80 = tpu.matmul %79, %7, %cst_33 {dimension_numbers = #tpu.dot_dimension_numbers<[1], [0], [0], [1], [0, 0, 1, 1], [], []>} : vector<2x128xf32>, vector<128x128xf32>, vector<2x128xf32> -> vector<2x128xf32>
    %81 = vector.broadcast %14 : vector<1x128xf32> to vector<2x128xf32>
    %82 = arith.addf %80, %81 : vector<2x128xf32>
    %cst_34 = arith.constant 0.000000e+00 : f32
    %83 = vector.broadcast %cst_34 : f32 to vector<2x128xf32>
    %84 = arith.maximumf %82, %83 : vector<2x128xf32>
    %85 = vector.broadcast %1 : f32 to vector<2x128xf32>
    %86 = arith.mulf %84, %85 : vector<2x128xf32>
    %cst_35 = arith.constant dense<0.000000e+00> : vector<2x128xf32>
    %87 = tpu.matmul %86, %8, %cst_35 {dimension_numbers = #tpu.dot_dimension_numbers<[1], [0], [0], [1], [0, 0, 1, 1], [], []>} : vector<2x128xf32>, vector<128x128xf32>, vector<2x128xf32> -> vector<2x128xf32>
    %88 = vector.broadcast %15 : vector<1x128xf32> to vector<2x128xf32>
    %89 = arith.addf %87, %88 : vector<2x128xf32>
    %cst_36 = arith.constant 0.000000e+00 : f32
    %90 = vector.broadcast %cst_36 : f32 to vector<2x128xf32>
    %91 = arith.maximumf %89, %90 : vector<2x128xf32>
    %92 = vector.broadcast %1 : f32 to vector<2x128xf32>
    %93 = arith.mulf %91, %92 : vector<2x128xf32>
    %cst_37 = arith.constant dense<0.000000e+00> : vector<2x128xf32>
    %94 = tpu.matmul %93, %9, %cst_37 {dimension_numbers = #tpu.dot_dimension_numbers<[1], [0], [0], [1], [0, 0, 1, 1], [], []>} : vector<2x128xf32>, vector<128x128xf32>, vector<2x128xf32> -> vector<2x128xf32>
    %95 = vector.broadcast %16 : vector<1x128xf32> to vector<2x128xf32>
    %96 = arith.addf %94, %95 : vector<2x128xf32>
    %c0_38 = arith.constant 0 : index
    %c0_39 = arith.constant 0 : index
    %97 = vector.load %arg6[%c0_38, %c0_39] : memref<2x128xf32, #tpu.memory_space<vmem>>, vector<2x128xf32>
    tpu.vector_store %arg6[%c0_38, %c0_39], %96 {strides = array<i32>} : memref<2x128xf32, #tpu.memory_space<vmem>>, vector<2x128xf32>,
    return
  }
  func.func @transform_0(%arg0: i32) -> (i32, i32) {
    %c0_i32 = arith.constant 0 : i32
    %c0_i32_0 = arith.constant 0 : i32
    return %arg0, %c0_i32 : i32, i32
  }
  func.func @transform_1(%arg0: i32) -> (i32, i32, i32) {
    %c0_i32 = arith.constant 0 : i32
    %c0_i32_0 = arith.constant 0 : i32
    %c0_i32_1 = arith.constant 0 : i32
    return %arg0, %c0_i32, %c0_i32_0 : i32, i32, i32
  }
  func.func @transform_2(%arg0: i32) -> (i32, i32) {
    %c0_i32 = arith.constant 0 : i32
    %c0_i32_0 = arith.constant 0 : i32
    %c0_i32_1 = arith.constant 0 : i32
    return %c0_i32, %c0_i32_0 : i32, i32
  }
  func.func @transform_3(%arg0: i32) -> (i32, i32) {
    %c0_i32 = arith.constant 0 : i32
    %c0_i32_0 = arith.constant 0 : i32
    %c0_i32_1 = arith.constant 0 : i32
    return %c0_i32, %c0_i32_0 : i32, i32
  }
  func.func @transform_4(%arg0: i32) -> (i32, i32) {
    %c0_i32 = arith.constant 0 : i32
    %c0_i32_0 = arith.constant 0 : i32
    return %arg0, %c0_i32 : i32, i32
  }
  func.func @transform_5(%arg0: i32) -> (i32, i32) {
    %c0_i32 = arith.constant 0 : i32
    %c0_i32_0 = arith.constant 0 : i32
    return %arg0, %c0_i32 : i32, i32
  }
}

</mosaic_0001>

<llo_original>
// kernel: tpu_custom_call.1
$region0: #{tpu_custom_call.1}
  #allocation0 [shape = 'u32[]', space=smem, size = 0x4, offset = 0x4, fixed_abs, tag = 'smem constant byte address 0x4 - core index']
  #allocation1 [shape = 'u32[144,128]{1,0:T(1,128)}', space=vmem, size = 0x12000, scoped, tag = 'internal scratch']
  %s0 = inlined_call_operand.hbm [shape: f32[16,128], index: 0, kind: input, shape index: {}]
  %s1 = inlined_call_operand.hbm [shape: f32[2,8,8], index: 1, kind: input, shape index: {}]
  %s2 = inlined_call_operand.hbm [shape: f32[768,256], index: 2, kind: input, shape index: {}]
  %s3 = inlined_call_operand.vmem [shape: f32[8,128], index: 3, kind: input, shape index: {}]
  %s4 = inlined_call_operand.hbm [shape: f32[16,128], index: 4, kind: output, shape index: {0}]
  %s5 = inlined_call_operand.hbm [shape: f32[2,128], index: 5, kind: output, shape index: {1}]
  %6 = xla_tuple %s4, %s5
  %s7 = sld [smem:[#allocation0]]
  $region46: #{tpu_custom_call.1} parent=0
    _
  %s9 = ssub.s32 1, %s7
  %s10 = scalar_select 0, %s9, %s7
  $region1: #{tpu_custom_call.1} parent=0
    #allocation2 [shape = 'u8[8192]{0}', space=vmem, size = 0x2000, scoped, tag = 'input window, operand 0, single buffered']
    #allocation3 [shape = 's32[1]{0}', space=sflag, size = 0x4, scoped, tag = 'scoped memory for tpu_custom_call.1']
    #allocation4 [shape = 's32[1]{0}', space=sflag, size = 0x4, scoped, tag = 'scoped memory for tpu_custom_call.1']
    #allocation5 [shape = 'u8[8192]{0}', space=vmem, size = 0x2000, scoped, tag = 'input window, operand 1, single buffered']
    #allocation6 [shape = 's32[1]{0}', space=sflag, size = 0x4, scoped, tag = 'scoped memory for tpu_custom_call.1']
    #allocation7 [shape = 'u8[786432]{0}', space=vmem, size = 0xc0000, scoped, tag = 'input window, operand 2, single buffered']
    #allocation8 [shape = 'u8[8192]{0}', space=vmem, size = 0x2000, scoped, tag = 'output window, operand 0, single buffered']
    #allocation9 [shape = 'u8[1024]{0}', space=vmem, size = 0x400, scoped, tag = 'output window, operand 1, single buffered']
    #allocation10 [shape = 's32[1]{0}', space=sflag, size = 0x4, scoped, tag = 'scoped memory for tpu_custom_call.1']
    %11 = vsyncpa [#allocation3], 0
    %12 = vsyncpa [#allocation6], 0
    %13 = vsyncpa [#allocation4], 0
    %14 = vsyncpa [#allocation10], 0
    // Predicated region
    $region2: #{tpu_custom_call.1} parent=1 // pred_check
      _
    $region3: #{tpu_custom_call.1} parent=1 // pred_check_branch
      %16 = sbr.rel (0) target = $region5
    $region4: #{tpu_custom_call.1} parent=1 // pred_region
      %s18 = ssub.s32 256, 256
      %19 = vsyncadd [#allocation3], %s18
      %s20 = sshll.u32 [#allocation2], 4
      %s21 = int_to_ptr.vmem [resolvable:$true] %s20
      %26 = dma.hbm_to_vmem [thread:$0]  %s0, 256, %s21, [#allocation3], 128, 128, 8
    $region5: #{tpu_custom_call.1} parent=1 // pred_fallthru
      _
    // Predicated region
    $region6: #{tpu_custom_call.1} parent=1 // pred_check
      _
    $region7: #{tpu_custom_call.1} parent=1 // pred_check_branch
      %28 = sbr.rel (0) target = $region9
    $region8: #{tpu_custom_call.1} parent=1 // pred_region
      %s30 = ssub.s32 256, 256
      %31 = vsyncadd [#allocation6], %s30
      %s32 = sshll.u32 [#allocation5], 4
      %s33 = int_to_ptr.vmem [resolvable:$true] %s32
      %38 = dma.hbm_to_vmem [thread:$0]  %s1, 256, %s33, [#allocation6], 128, 128, 8
    $region9: #{tpu_custom_call.1} parent=1 // pred_fallthru
      _
    // Predicated region
    $region10: #{tpu_custom_call.1} parent=1 // pred_check
      _
    $region11: #{tpu_custom_call.1} parent=1 // pred_check_branch
      %40 = sbr.rel (0) target = $region13
    $region12: #{tpu_custom_call.1} parent=1 // pred_region
      %s42 = ssub.s32 24576, 24576
      %43 = vsyncadd [#allocation6], %s42
      %s44 = sshll.u32 [#allocation7], 4
      %s45 = int_to_ptr.vmem [resolvable:$true] %s44
      %50 = dma.hbm_to_vmem [thread:$0]  %s2, 24576, %s45, [#allocation6], 256, 256, 16
    $region13: #{tpu_custom_call.1} parent=1 // pred_fallthru
      _
    // Predicated region
    $region14: #{tpu_custom_call.1} parent=1 // pred_check
      _
    $region15: #{tpu_custom_call.1} parent=1 // pred_check_branch
      %52 = sbr.rel (0) target = $region17
    $region16: #{tpu_custom_call.1} parent=1 // pred_region
      _
    $region17: #{tpu_custom_call.1} parent=1 // pred_fallthru
      _
    // Predicated region
    $region18: #{tpu_custom_call.1} parent=1 // pred_check
      _
    $region19: #{tpu_custom_call.1} parent=1 // pred_check_branch
      %54 = sbr.rel (0) target = $region21
    $region20: #{tpu_custom_call.1} parent=1 // pred_region
      %55 = dma.done [#allocation3], 256
    $region21: #{tpu_custom_call.1} parent=1 // pred_fallthru
      _
    // Predicated region
    $region22: #{tpu_custom_call.1} parent=1 // pred_check
      _
    $region23: #{tpu_custom_call.1} parent=1 // pred_check_branch
      %57 = sbr.rel (0) target = $region25
    $region24: #{tpu_custom_call.1} parent=1 // pred_region
      %58 = dma.done [#allocation6], 256
    $region25: #{tpu_custom_call.1} parent=1 // pred_fallthru
      _
    // Predicated region
    $region26: #{tpu_custom_call.1} parent=1 // pred_check
      _
    $region27: #{tpu_custom_call.1} parent=1 // pred_check_branch
      %60 = sbr.rel (0) target = $region29
    $region28: #{tpu_custom_call.1} parent=1 // pred_region
      %61 = dma.done [#allocation6], 24576
    $region29: #{tpu_custom_call.1} parent=1 // pred_fallthru
      _
    %v62 = vld [vmem:[#allocation2] sm:$0xff]
    %v63 = vld [vmem:[#allocation2 + $0x8] sm:$0xff]
    %v64 = vld [vmem:[#allocation5] sm:$0xff]
    %v65 = vld [vmem:[#allocation5 + $0x8] sm:$0xff]
    %v66 = vld [vmem:[#allocation7] sm:$0xff]
    %v67 = vld [vmem:[#allocation7 + $0x8] sm:$0xff]
    %v68 = vld [vmem:[#allocation7 + $0x10] sm:$0xff]
    %v69 = vld [vmem:[#allocation7 + $0x18] sm:$0xff]
    %v70 = vld [vmem:[#allocation7 + $0x20] sm:$0xff]
    %v71 = vld [vmem:[#allocation7 + $0x28] sm:$0xff]
    %v72 = vld [vmem:[#allocation7 + $0x30] sm:$0xff]
    %v73 = vld [vmem:[#allocation7 + $0x38] sm:$0xff]
    %v74 = vld [vmem:[#allocation7 + $0x40] sm:$0xff]
    %v75 = vld [vmem:[#allocation7 + $0x48] sm:$0xff]
    %v76 = vld [vmem:[#allocation7 + $0x50] sm:$0xff]
    %v77 = vld [vmem:[#allocation7 + $0x58] sm:$0xff]
    %v78 = vld [vmem:[#allocation7 + $0x60] sm:$0xff]
    %v79 = vld [vmem:[#allocation7 + $0x68] sm:$0xff]
    %v80 = vld [vmem:[#allocation7 + $0x70] sm:$0xff]
    %v81 = vld [vmem:[#allocation7 + $0x78] sm:$0xff]
    %v82 = vld [vmem:[#allocation7 + $0x80] sm:$0xff]
    %v83 = vld [vmem:[#allocation7 + $0x88] sm:$0xff]
    %v84 = vld [vmem:[#allocation7 + $0x90] sm:$0xff]
    %v85 = vld [vmem:[#allocation7 + $0x98] sm:$0xff]
    %v86 = vld [vmem:[#allocation7 + $0xa0] sm:$0xff]
    %v87 = vld [vmem:[#allocation7 + $0xa8] sm:$0xff]
    %v88 = vld [vmem:[#allocation7 + $0xb0] sm:$0xff]
    %v89 = vld [vmem:[#allocation7 + $0xb8] sm:$0xff]
    %v90 = vld [vmem:[#allocation7 + $0xc0] sm:$0xff]
    %v91 = vld [vmem:[#allocation7 + $0xc8] sm:$0xff]
    %v92 = vld [vmem:[#allocation7 + $0xd0] sm:$0xff]
    %v93 = vld [vmem:[#allocation7 + $0xd8] sm:$0xff]
    %v94 = vld [vmem:[#allocation7 + $0xe0] sm:$0xff]
    %v95 = vld [vmem:[#allocation7 + $0xe8] sm:$0xff]
    %v96 = vld [vmem:[#allocation7 + $0xf0] sm:$0xff]
    %v97 = vld [vmem:[#allocation7 + $0xf8] sm:$0xff]
    %v98 = vld [vmem:[#allocation7 + $0x100] sm:$0xff]
    %v99 = vld [vmem:[#allocation7 + $0x110] sm:$0xff]
    %v100 = vld [vmem:[#allocation7 + $0x120] sm:$0xff]
    %v101 = vld [vmem:[#allocation7 + $0x130] sm:$0xff]
    %v102 = vld [vmem:[#allocation7 + $0x140] sm:$0xff]
    %v103 = vld [vmem:[#allocation7 + $0x150] sm:$0xff]
    %v104 = vld [vmem:[#allocation7 + $0x160] sm:$0xff]
    %v105 = vld [vmem:[#allocation7 + $0x170] sm:$0xff]
    %v106 = vld [vmem:[#allocation7 + $0x180] sm:$0xff]
    %v107 = vld [vmem:[#allocation7 + $0x190] sm:$0xff]
    %v108 = vld [vmem:[#allocation7 + $0x1a0] sm:$0xff]
    %v109 = vld [vmem:[#allocation7 + $0x1b0] sm:$0xff]
    %v110 = vld [vmem:[#allocation7 + $0x1c0] sm:$0xff]
    %v111 = vld [vmem:[#allocation7 + $0x1d0] sm:$0xff]
    %v112 = vld [vmem:[#allocation7 + $0x1e0] sm:$0xff]
    %v113 = vld [vmem:[#allocation7 + $0x1f0] sm:$0xff]
    %v114 = vld [vmem:[#allocation7 + $0x200] sm:$0xff]
    %v115 = vld [vmem:[#allocation7 + $0x210] sm:$0xff]
    %v116 = vld [vmem:[#allocation7 + $0x220] sm:$0xff]
    %v117 = vld [vmem:[#allocation7 + $0x230] sm:$0xff]
    %v118 = vld [vmem:[#allocation7 + $0x240] sm:$0xff]
    %v119 = vld [vmem:[#allocation7 + $0x250] sm:$0xff]
    %v120 = vld [vmem:[#allocation7 + $0x260] sm:$0xff]
    %v121 = vld [vmem:[#allocation7 + $0x270] sm:$0xff]
    %v122 = vld [vmem:[#allocation7 + $0x280] sm:$0xff]
    %v123 = vld [vmem:[#allocation7 + $0x290] sm:$0xff]
    %v124 = vld [vmem:[#allocation7 + $0x2a0] sm:$0xff]
    %v125 = vld [vmem:[#allocation7 + $0x2b0] sm:$0xff]
    %v126 = vld [vmem:[#allocation7 + $0x2c0] sm:$0xff]
    %v127 = vld [vmem:[#allocation7 + $0x2d0] sm:$0xff]
    %v128 = vld [vmem:[#allocation7 + $0x2e0] sm:$0xff]
    %v129 = vld [vmem:[#allocation7 + $0x2f0] sm:$0xff]
    %v130 = vld [vmem:[#allocation7 + $0x300] sm:$0xff]
    %v131 = vld [vmem:[#allocation7 + $0x310] sm:$0xff]
    %v132 = vld [vmem:[#allocation7 + $0x320] sm:$0xff]
    %v133 = vld [vmem:[#allocation7 + $0x330] sm:$0xff]
    %v134 = vld [vmem:[#allocation7 + $0x340] sm:$0xff]
    %v135 = vld [vmem:[#allocation7 + $0x350] sm:$0xff]
    %v136 = vld [vmem:[#allocation7 + $0x360] sm:$0xff]
    %v137 = vld [vmem:[#allocation7 + $0x370] sm:$0xff]
    %v138 = vld [vmem:[#allocation7 + $0x380] sm:$0xff]
    %v139 = vld [vmem:[#allocation7 + $0x390] sm:$0xff]
    %v140 = vld [vmem:[#allocation7 + $0x3a0] sm:$0xff]
    %v141 = vld [vmem:[#allocation7 + $0x3b0] sm:$0xff]
    %v142 = vld [vmem:[#allocation7 + $0x3c0] sm:$0xff]
    %v143 = vld [vmem:[#allocation7 + $0x3d0] sm:$0xff]
    %v144 = vld [vmem:[#allocation7 + $0x3e0] sm:$0xff]
    %v145 = vld [vmem:[#allocation7 + $0x3f0] sm:$0xff]
    %v146 = vld [vmem:[#allocation7 + $0x400] sm:$0xff]
    %v147 = vld [vmem:[#allocation7 + $0x410] sm:$0xff]
    %v148 = vld [vmem:[#allocation7 + $0x420] sm:$0xff]
    %v149 = vld [vmem:[#allocation7 + $0x430] sm:$0xff]
    %v150 = vld [vmem:[#allocation7 + $0x440] sm:$0xff]
    %v151 = vld [vmem:[#allocation7 + $0x450] sm:$0xff]
    %v152 = vld [vmem:[#allocation7 + $0x460] sm:$0xff]
    %v153 = vld [vmem:[#allocation7 + $0x470] sm:$0xff]
    %v154 = vld [vmem:[#allocation7 + $0x480] sm:$0xff]
    %v155 = vld [vmem:[#allocation7 + $0x490] sm:$0xff]
    %v156 = vld [vmem:[#allocation7 + $0x4a0] sm:$0xff]
    %v157 = vld [vmem:[#allocation7 + $0x4b0] sm:$0xff]
    %v158 = vld [vmem:[#allocation7 + $0x4c0] sm:$0xff]
    %v159 = vld [vmem:[#allocation7 + $0x4d0] sm:$0xff]
    %v160 = vld [vmem:[#allocation7 + $0x4e0] sm:$0xff]
    %v161 = vld [vmem:[#allocation7 + $0x4f0] sm:$0xff]
    %v162 = vld [vmem:[#allocation7 + $0x500] sm:$0xff]
    %v163 = vld [vmem:[#allocation7 + $0x510] sm:$0xff]
    %v164 = vld [vmem:[#allocation7 + $0x520] sm:$0xff]
    %v165 = vld [vmem:[#allocation7 + $0x530] sm:$0xff]
    %v166 = vld [vmem:[#allocation7 + $0x540] sm:$0xff]
    %v167 = vld [vmem:[#allocation7 + $0x550] sm:$0xff]
    %v168 = vld [vmem:[#allocation7 + $0x560] sm:$0xff]
    %v169 = vld [vmem:[#allocation7 + $0x570] sm:$0xff]
    %v170 = vld [vmem:[#allocation7 + $0x580] sm:$0xff]
    %v171 = vld [vmem:[#allocation7 + $0x590] sm:$0xff]
    %v172 = vld [vmem:[#allocation7 + $0x5a0] sm:$0xff]
    %v173 = vld [vmem:[#allocation7 + $0x5b0] sm:$0xff]
    %v174 = vld [vmem:[#allocation7 + $0x5c0] sm:$0xff]
    %v175 = vld [vmem:[#allocation7 + $0x5d0] sm:$0xff]
    %v176 = vld [vmem:[#allocation7 + $0x5e0] sm:$0xff]
    %v177 = vld [vmem:[#allocation7 + $0x5f0] sm:$0xff]
    %v178 = vld [vmem:[%s3] sm:$0xff]
    %179 = vmatprep.subr.mxu0 %v67
    %180 = vmatpush1.msra.mxu0 %v66
    %181 = vmatprep.subr.mxu0 %v69
    %182 = vmatpush1.msra.mxu0 %v68
    %183 = vmatprep.subr.mxu0 %v71
    %184 = vmatpush1.msra.mxu0 %v70
    %185 = vmatprep.subr.mxu0 %v73
    %186 = vmatpush1.msra.mxu0 %v72
    %187 = vmatprep.subr.mxu0 %v75
    %188 = vmatpush1.msra.mxu0 %v74
    %189 = vmatprep.subr.mxu0 %v77
    %190 = vmatpush1.msra.mxu0 %v76
    %191 = vmatprep.subr.mxu0 %v79
    %192 = vmatpush1.msra.mxu0 %v78
    %193 = vmatprep.subr.mxu0 %v81
    %194 = vmatpush1.msra.mxu0 %v80
    %195 = vmatprep.subr.mxu0 %v83
    %196 = vmatpush1.msra.mxu0 %v82
    %197 = vmatprep.subr.mxu0 %v85
    %198 = vmatpush1.msra.mxu0 %v84
    %199 = vmatprep.subr.mxu0 %v87
    %200 = vmatpush1.msra.mxu0 %v86
    %201 = vmatprep.subr.mxu0 %v89
    %202 = vmatpush1.msra.mxu0 %v88
    %203 = vmatprep.subr.mxu0 %v91
    %204 = vmatpush1.msra.mxu0 %v90
    %205 = vmatprep.subr.mxu0 %v93
    %206 = vmatpush1.msra.mxu0 %v92
    %207 = vmatprep.subr.mxu0 %v95
    %208 = vmatpush1.msra.mxu0 %v94
    %209 = vmatprep.subr.mxu0 %v97
    %210 = vmatpush1.msra.mxu0 %v96
    %211 = vmatprep.subr.mxu0 0.0
    %212 = vmatpush1.msra.mxu0 0.0
    %213 = vmatprep.subr.mxu0 0.0
    %214 = vmatpush1.msra.mxu0 0.0
    %215 = vmatprep.subr.mxu0 0.0
    %216 = vmatpush1.msra.mxu0 0.0
    %217 = vmatprep.subr.mxu0 0.0
    %218 = vmatpush1.msra.mxu0 0.0
    %219 = vmatprep.subr.mxu0 0.0
    %220 = vmatpush1.msra.mxu0 0.0
    %221 = vmatprep.subr.mxu0 0.0
    %222 = vmatpush1.msra.mxu0 0.0
    %223 = vmatprep.subr.mxu0 0.0
    %224 = vmatpush1.msra.mxu0 0.0
    %225 = vmatprep.subr.mxu0 0.0
    %226 = vmatpush1.msra.mxu0 0.0
    %227 = vmatprep.subr.mxu0 0.0
    %228 = vmatpush1.msra.mxu0 0.0
    %229 = vmatprep.subr.mxu0 0.0
    %230 = vmatpush1.msra.mxu0 0.0
    %231 = vmatprep.subr.mxu0 0.0
    %232 = vmatpush1.msra.mxu0 0.0
    %233 = vmatprep.subr.mxu0 0.0
    %234 = vmatpush1.msra.mxu0 0.0
    %235 = vmatprep.subr.mxu0 0.0
    %236 = vmatpush1.msra.mxu0 0.0
    %237 = vmatprep.subr.mxu0 0.0
    %238 = vmatpush1.msra.mxu0 0.0
    %239 = vmatprep.subr.mxu0 0.0
    %240 = vmatpush1.msra.mxu0 0.0
    %241 = vmatprep.subr.mxu0 0.0
    %242 = vmatpush1.msra.mxu0 0.0
    %243 = vmatprep.mubr.f32.mxu0 0.0
    %244 = vmatmul.mubr.f32.gmra.mrb[0].mxu0 %v62
    %v245 = vpop.f32.mrb[0].mxu0
    %v246 = vadd.f32 0.0, %v245
    %v247 = vpop.f32.mrb[0].mxu0
    %v248 = vadd.f32 0.0, %v247
    %249 = vmatprep.mubr.f32.mxu0 0.0
    %250 = vmatmul.mubr.f32.gmra.mrb[0].mxu0 %v63
    %v251 = vpop.f32.mrb[0].mxu0
    %v252 = vadd.f32 0.0, %v251
    %v253 = vpop.f32.mrb[0].mxu0
    %v254 = vadd.f32 0.0, %v253
    %255 = vdwg.mxu0
    %v256 = vlaneseq
    %v257 = vshrl.u32 %v256, 7
    %v258 = vsub.s32 0, %v257
    %v259 = vrot.slane %v178, %v258
    %v260 = vadd.f32 %v246, %v259
    %v261 = vadd.f32 %v252, %v259
    %v262 = vmax.f32 %v260, 0.0
    %v263 = vmax.f32 %v261, 0.0
    %vm264 = vcmask 64512
    %v266 = vsel %vm264, %v64, 0
    %268 = vmatprep.subr.mxu0 0.0
    %269 = vmatpush1.msra.mxu0 %v262
    %270 = vmatprep.subr.mxu0 0.0
    %271 = vmatpush1.msra.mxu0 0.0
    %272 = vmatprep.subr.mxu0 0.0
    %273 = vmatpush1.msra.mxu0 0.0
    %274 = vmatprep.subr.mxu0 0.0
    %275 = vmatpush1.msra.mxu0 0.0
    %276 = vmatprep.subr.mxu0 0.0
    %277 = vmatpush1.msra.mxu0 0.0
    %278 = vmatprep.subr.mxu0 0.0
    %279 = vmatpush1.msra.mxu0 0.0
    %280 = vmatprep.subr.mxu0 0.0
    %281 = vmatpush1.msra.mxu0 0.0
    %282 = vmatprep.subr.mxu0 0.0
    %283 = vmatpush1.msra.mxu0 0.0
    %284 = vmatprep.subr.mxu0 0.0
    %285 = vmatpush1.msra.mxu0 0.0
    %286 = vmatprep.subr.mxu0 0.0
    %287 = vmatpush1.msra.mxu0 0.0
    %288 = vmatprep.subr.mxu0 0.0
    %289 = vmatpush1.msra.mxu0 0.0
    %290 = vmatprep.subr.mxu0 0.0
    %291 = vmatpush1.msra.mxu0 0.0
    %292 = vmatprep.subr.mxu0 0.0
    %293 = vmatpush1.msra.mxu0 0.0
    %294 = vmatprep.subr.mxu0 0.0
    %295 = vmatpush1.msra.mxu0 0.0
    %296 = vmatprep.subr.mxu0 0.0
    %297 = vmatpush1.msra.mxu0 0.0
    %298 = vmatprep.subr.mxu0 0.0
    %299 = vmatpush1.msra.mxu0 0.0
    %300 = vmatprep.subr.mxu0 0.0
    %301 = vmatpush1.msra.mxu0 0.0
    %302 = vmatprep.subr.mxu0 0.0
    %303 = vmatpush1.msra.mxu0 0.0
    %304 = vmatprep.subr.mxu0 0.0
    %305 = vmatpush1.msra.mxu0 0.0
    %306 = vmatprep.subr.mxu0 0.0
    %307 = vmatpush1.msra.mxu0 0.0
    %308 = vmatprep.subr.mxu0 0.0
    %309 = vmatpush1.msra.mxu0 0.0
    %310 = vmatprep.subr.mxu0 0.0
    %311 = vmatpush1.msra.mxu0 0.0
    %312 = vmatprep.subr.mxu0 0.0
    %313 = vmatpush1.msra.mxu0 0.0
    %314 = vmatprep.subr.mxu0 0.0
    %315 = vmatpush1.msra.mxu0 0.0
    %316 = vmatprep.subr.mxu0 0.0
    %317 = vmatpush1.msra.mxu0 0.0
    %318 = vmatprep.subr.mxu0 0.0
    %319 = vmatpush1.msra.mxu0 0.0
    %320 = vmatprep.subr.mxu0 0.0
    %321 = vmatpush1.msra.mxu0 0.0
    %322 = vmatprep.subr.mxu0 0.0
    %323 = vmatpush1.msra.mxu0 0.0
    %324 = vmatprep.subr.mxu0 0.0
    %325 = vmatpush1.msra.mxu0 0.0
    %326 = vmatprep.subr.mxu0 0.0
    %327 = vmatpush1.msra.mxu0 0.0
    %328 = vmatprep.subr.mxu0 0.0
    %329 = vmatpush1.msra.mxu0 0.0
    %330 = vmatprep.subr.mxu0 0.0
    %331 = vmatpush1.msra.mxu0 0.0
    %332 = vmatprep.mubr.f32.mxu0 0.0
    %333 = vmatmul.mubr.f32.gmra.mrb[0].mxu0 %v266
    %v334 = vpop.f32.mrb[0].mxu0
    %v335 = vadd.f32 0.0, %v334
    %v336 = vpop.f32.mrb[0].mxu0
    %337 = vdwg.mxu0
    %v339 = vsel %vm264, %v65, 0
    %341 = vmatprep.subr.mxu0 0.0
    %342 = vmatpush1.msra.mxu0 %v263
    %343 = vmatprep.subr.mxu0 0.0
    %344 = vmatpush1.msra.mxu0 0.0
    %345 = vmatprep.subr.mxu0 0.0
    %346 = vmatpush1.msra.mxu0 0.0
    %347 = vmatprep.subr.mxu0 0.0
    %348 = vmatpush1.msra.mxu0 0.0
    %349 = vmatprep.subr.mxu0 0.0
    %350 = vmatpush1.msra.mxu0 0.0
    %351 = vmatprep.subr.mxu0 0.0
    %352 = vmatpush1.msra.mxu0 0.0
    %353 = vmatprep.subr.mxu0 0.0
    %354 = vmatpush1.msra.mxu0 0.0
    %355 = vmatprep.subr.mxu0 0.0
    %356 = vmatpush1.msra.mxu0 0.0
    %357 = vmatprep.subr.mxu0 0.0
    %358 = vmatpush1.msra.mxu0 0.0
    %359 = vmatprep.subr.mxu0 0.0
    %360 = vmatpush1.msra.mxu0 0.0
    %361 = vmatprep.subr.mxu0 0.0
    %362 = vmatpush1.msra.mxu0 0.0
    %363 = vmatprep.subr.mxu0 0.0
    %364 = vmatpush1.msra.mxu0 0.0
    %365 = vmatprep.subr.mxu0 0.0
    %366 = vmatpush1.msra.mxu0 0.0
    %367 = vmatprep.subr.mxu0 0.0
    %368 = vmatpush1.msra.mxu0 0.0
    %369 = vmatprep.subr.mxu0 0.0
    %370 = vmatpush1.msra.mxu0 0.0
    %371 = vmatprep.subr.mxu0 0.0
    %372 = vmatpush1.msra.mxu0 0.0
    %373 = vmatprep.subr.mxu0 0.0
    %374 = vmatpush1.msra.mxu0 0.0
    %375 = vmatprep.subr.mxu0 0.0
    %376 = vmatpush1.msra.mxu0 0.0
    %377 = vmatprep.subr.mxu0 0.0
    %378 = vmatpush1.msra.mxu0 0.0
    %379 = vmatprep.subr.mxu0 0.0
    %380 = vmatpush1.msra.mxu0 0.0
    %381 = vmatprep.subr.mxu0 0.0
    %382 = vmatpush1.msra.mxu0 0.0
    %383 = vmatprep.subr.mxu0 0.0
    %384 = vmatpush1.msra.mxu0 0.0
    %385 = vmatprep.subr.mxu0 0.0
    %386 = vmatpush1.msra.mxu0 0.0
    %387 = vmatprep.subr.mxu0 0.0
    %388 = vmatpush1.msra.mxu0 0.0
    %389 = vmatprep.subr.mxu0 0.0
    %390 = vmatpush1.msra.mxu0 0.0
    %391 = vmatprep.subr.mxu0 0.0
    %392 = vmatpush1.msra.mxu0 0.0
    %393 = vmatprep.subr.mxu0 0.0
    %394 = vmatpush1.msra.mxu0 0.0
    %395 = vmatprep.subr.mxu0 0.0
    %396 = vmatpush1.msra.mxu0 0.0
    %397 = vmatprep.subr.mxu0 0.0
    %398 = vmatpush1.msra.mxu0 0.0
    %399 = vmatprep.subr.mxu0 0.0
    %400 = vmatpush1.msra.mxu0 0.0
    %401 = vmatprep.subr.mxu0 0.0
    %402 = vmatpush1.msra.mxu0 0.0
    %403 = vmatprep.subr.mxu0 0.0
    %404 = vmatpush1.msra.mxu0 0.0
    %405 = vmatprep.mubr.f32.mxu0 0.0
    %406 = vmatmul.mubr.f32.gmra.mrb[0].mxu0 %v339
    %v407 = vpop.f32.mrb[0].mxu0
    %v408 = vadd.f32 0.0, %v407
    %v409 = vpop.f32.mrb[0].mxu0
    %410 = vdwg.mxu0
    %v411 = vmul.f32 %v335, 0.999995
    %v412 = vmul.f32 %v408, 0.999995
    %v413 = vmax.f32 %v411, 0.0
    %v414 = vmax.f32 %v412, 0.0
    %v415 = vadd.f32 %v413, %v248
    %v416 = vadd.f32 %v414, %v254
    %v417 = vmul.f32 %v415, 0.999995
    %v418 = vmul.f32 %v416, 0.999995
    %v419 = vmax.f32 %v417, 0.0
    %v420 = vmax.f32 %v418, 0.0
    %v421 = vlaneseq
    %v422 = vshrl.u32 %v421, 7
    %v423 = vsub.s32 1, %v422
    %v424 = vrot.slane %v178, %v423
    %425 = vmatprep.subr.mxu0 0.0
    %426 = vmatpush1.msra.mxu0 %v98
    %427 = vmatprep.subr.mxu0 0.0
    %428 = vmatpush1.msra.mxu0 %v99
    %429 = vmatprep.subr.mxu0 0.0
    %430 = vmatpush1.msra.mxu0 %v100
    %431 = vmatprep.subr.mxu0 0.0
    %432 = vmatpush1.msra.mxu0 %v101
    %433 = vmatprep.subr.mxu0 0.0
    %434 = vmatpush1.msra.mxu0 %v102
    %435 = vmatprep.subr.mxu0 0.0
    %436 = vmatpush1.msra.mxu0 %v103
    %437 = vmatprep.subr.mxu0 0.0
    %438 = vmatpush1.msra.mxu0 %v104
    %439 = vmatprep.subr.mxu0 0.0
    %440 = vmatpush1.msra.mxu0 %v105
    %441 = vmatprep.subr.mxu0 0.0
    %442 = vmatpush1.msra.mxu0 %v106
    %443 = vmatprep.subr.mxu0 0.0
    %444 = vmatpush1.msra.mxu0 %v107
    %445 = vmatprep.subr.mxu0 0.0
    %446 = vmatpush1.msra.mxu0 %v108
    %447 = vmatprep.subr.mxu0 0.0
    %448 = vmatpush1.msra.mxu0 %v109
    %449 = vmatprep.subr.mxu0 0.0
    %450 = vmatpush1.msra.mxu0 %v110
    %451 = vmatprep.subr.mxu0 0.0
    %452 = vmatpush1.msra.mxu0 %v111
    %453 = vmatprep.subr.mxu0 0.0
    %454 = vmatpush1.msra.mxu0 %v112
    %455 = vmatprep.subr.mxu0 0.0
    %456 = vmatpush1.msra.mxu0 %v113
    %457 = vmatprep.subr.mxu0 0.0
    %458 = vmatpush1.msra.mxu0 0.0
    %459 = vmatprep.subr.mxu0 0.0
    %460 = vmatpush1.msra.mxu0 0.0
    %461 = vmatprep.subr.mxu0 0.0
    %462 = vmatpush1.msra.mxu0 0.0
    %463 = vmatprep.subr.mxu0 0.0
    %464 = vmatpush1.msra.mxu0 0.0
    %465 = vmatprep.subr.mxu0 0.0
    %466 = vmatpush1.msra.mxu0 0.0
    %467 = vmatprep.subr.mxu0 0.0
    %468 = vmatpush1.msra.mxu0 0.0
    %469 = vmatprep.subr.mxu0 0.0
    %470 = vmatpush1.msra.mxu0 0.0
    %471 = vmatprep.subr.mxu0 0.0
    %472 = vmatpush1.msra.mxu0 0.0
    %473 = vmatprep.subr.mxu0 0.0
    %474 = vmatpush1.msra.mxu0 0.0
    %475 = vmatprep.subr.mxu0 0.0
    %476 = vmatpush1.msra.mxu0 0.0
    %477 = vmatprep.subr.mxu0 0.0
    %478 = vmatpush1.msra.mxu0 0.0
    %479 = vmatprep.subr.mxu0 0.0
    %480 = vmatpush1.msra.mxu0 0.0
    %481 = vmatprep.subr.mxu0 0.0
    %482 = vmatpush1.msra.mxu0 0.0
    %483 = vmatprep.subr.mxu0 0.0
    %484 = vmatpush1.msra.mxu0 0.0
    %485 = vmatprep.subr.mxu0 0.0
    %486 = vmatpush1.msra.mxu0 0.0
    %487 = vmatprep.subr.mxu0 0.0
    %488 = vmatpush1.msra.mxu0 0.0
    %489 = vmatprep.mubr.f32.mxu0 0.0
    %490 = vmatmul.mubr.f32.gmra.mrb[0].mxu0 %v419
    %v491 = vpop.f32.mrb[0].mxu0
    %v492 = vadd.f32 %v424, %v491
    %v493 = vpop.f32.mrb[0].mxu0
    %494 = vmatprep.mubr.f32.mxu0 0.0
    %495 = vmatmul.mubr.f32.gmra.mrb[0].mxu0 %v420
    %v496 = vpop.f32.mrb[0].mxu0
    %v497 = vadd.f32 %v424, %v496
    %v498 = vpop.f32.mrb[0].mxu0
    %499 = vdwg.mxu0
    %v500 = vmax.f32 %v492, 0.0
    %v501 = vmax.f32 %v497, 0.0
    %502 = vmatprep.subr.mxu0 0.0
    %503 = vmatpush1.msra.mxu0 %v500
    %504 = vmatprep.subr.mxu0 0.0
    %505 = vmatpush1.msra.mxu0 0.0
    %506 = vmatprep.subr.mxu0 0.0
    %507 = vmatpush1.msra.mxu0 0.0
    %508 = vmatprep.subr.mxu0 0.0
    %509 = vmatpush1.msra.mxu0 0.0
    %510 = vmatprep.subr.mxu0 0.0
    %511 = vmatpush1.msra.mxu0 0.0
    %512 = vmatprep.subr.mxu0 0.0
    %513 = vmatpush1.msra.mxu0 0.0
    %514 = vmatprep.subr.mxu0 0.0
    %515 = vmatpush1.msra.mxu0 0.0
    %516 = vmatprep.subr.mxu0 0.0
    %517 = vmatpush1.msra.mxu0 0.0
    %518 = vmatprep.subr.mxu0 0.0
    %519 = vmatpush1.msra.mxu0 0.0
    %520 = vmatprep.subr.mxu0 0.0
    %521 = vmatpush1.msra.mxu0 0.0
    %522 = vmatprep.subr.mxu0 0.0
    %523 = vmatpush1.msra.mxu0 0.0
    %524 = vmatprep.subr.mxu0 0.0
    %525 = vmatpush1.msra.mxu0 0.0
    %526 = vmatprep.subr.mxu0 0.0
    %527 = vmatpush1.msra.mxu0 0.0
    %528 = vmatprep.subr.mxu0 0.0
    %529 = vmatpush1.msra.mxu0 0.0
    %530 = vmatprep.subr.mxu0 0.0
    %531 = vmatpush1.msra.mxu0 0.0
    %532 = vmatprep.subr.mxu0 0.0
    %533 = vmatpush1.msra.mxu0 0.0
    %534 = vmatprep.subr.mxu0 0.0
    %535 = vmatpush1.msra.mxu0 0.0
    %536 = vmatprep.subr.mxu0 0.0
    %537 = vmatpush1.msra.mxu0 0.0
    %538 = vmatprep.subr.mxu0 0.0
    %539 = vmatpush1.msra.mxu0 0.0
    %540 = vmatprep.subr.mxu0 0.0
    %541 = vmatpush1.msra.mxu0 0.0
    %542 = vmatprep.subr.mxu0 0.0
    %543 = vmatpush1.msra.mxu0 0.0
    %544 = vmatprep.subr.mxu0 0.0
    %545 = vmatpush1.msra.mxu0 0.0
    %546 = vmatprep.subr.mxu0 0.0
    %547 = vmatpush1.msra.mxu0 0.0
    %548 = vmatprep.subr.mxu0 0.0
    %549 = vmatpush1.msra.mxu0 0.0
    %550 = vmatprep.subr.mxu0 0.0
    %551 = vmatpush1.msra.mxu0 0.0
    %552 = vmatprep.subr.mxu0 0.0
    %553 = vmatpush1.msra.mxu0 0.0
    %554 = vmatprep.subr.mxu0 0.0
    %555 = vmatpush1.msra.mxu0 0.0
    %556 = vmatprep.subr.mxu0 0.0
    %557 = vmatpush1.msra.mxu0 0.0
    %558 = vmatprep.subr.mxu0 0.0
    %559 = vmatpush1.msra.mxu0 0.0
    %560 = vmatprep.subr.mxu0 0.0
    %561 = vmatpush1.msra.mxu0 0.0
    %562 = vmatprep.subr.mxu0 0.0
    %563 = vmatpush1.msra.mxu0 0.0
    %564 = vmatprep.subr.mxu0 0.0
    %565 = vmatpush1.msra.mxu0 0.0
    %566 = vmatprep.mubr.f32.mxu0 0.0
    %567 = vmatmul.mubr.f32.gmra.mrb[0].mxu0 %v266
    %v568 = vpop.f32.mrb[0].mxu0
    %v569 = vadd.f32 0.0, %v568
    %v570 = vpop.f32.mrb[0].mxu0
    %571 = vdwg.mxu0
    %572 = vmatprep.subr.mxu0 0.0
    %573 = vmatpush1.msra.mxu0 %v501
    %574 = vmatprep.subr.mxu0 0.0
    %575 = vmatpush1.msra.mxu0 0.0
    %576 = vmatprep.subr.mxu0 0.0
    %577 = vmatpush1.msra.mxu0 0.0
    %578 = vmatprep.subr.mxu0 0.0
    %579 = vmatpush1.msra.mxu0 0.0
    %580 = vmatprep.subr.mxu0 0.0
    %581 = vmatpush1.msra.mxu0 0.0
    %582 = vmatprep.subr.mxu0 0.0
    %583 = vmatpush1.msra.mxu0 0.0
    %584 = vmatprep.subr.mxu0 0.0
    %585 = vmatpush1.msra.mxu0 0.0
    %586 = vmatprep.subr.mxu0 0.0
    %587 = vmatpush1.msra.mxu0 0.0
    %588 = vmatprep.subr.mxu0 0.0
    %589 = vmatpush1.msra.mxu0 0.0
    %590 = vmatprep.subr.mxu0 0.0
    %591 = vmatpush1.msra.mxu0 0.0
    %592 = vmatprep.subr.mxu0 0.0
    %593 = vmatpush1.msra.mxu0 0.0
    %594 = vmatprep.subr.mxu0 0.0
    %595 = vmatpush1.msra.mxu0 0.0
    %596 = vmatprep.subr.mxu0 0.0
    %597 = vmatpush1.msra.mxu0 0.0
    %598 = vmatprep.subr.mxu0 0.0
    %599 = vmatpush1.msra.mxu0 0.0
    %600 = vmatprep.subr.mxu0 0.0
    %601 = vmatpush1.msra.mxu0 0.0
    %602 = vmatprep.subr.mxu0 0.0
    %603 = vmatpush1.msra.mxu0 0.0
    %604 = vmatprep.subr.mxu0 0.0
    %605 = vmatpush1.msra.mxu0 0.0
    %606 = vmatprep.subr.mxu0 0.0
    %607 = vmatpush1.msra.mxu0 0.0
    %608 = vmatprep.subr.mxu0 0.0
    %609 = vmatpush1.msra.mxu0 0.0
    %610 = vmatprep.subr.mxu0 0.0
    %611 = vmatpush1.msra.mxu0 0.0
    %612 = vmatprep.subr.mxu0 0.0
    %613 = vmatpush1.msra.mxu0 0.0
    %614 = vmatprep.subr.mxu0 0.0
    %615 = vmatpush1.msra.mxu0 0.0
    %616 = vmatprep.subr.mxu0 0.0
    %617 = vmatpush1.msra.mxu0 0.0
    %618 = vmatprep.subr.mxu0 0.0
    %619 = vmatpush1.msra.mxu0 0.0
    %620 = vmatprep.subr.mxu0 0.0
    %621 = vmatpush1.msra.mxu0 0.0
    %622 = vmatprep.subr.mxu0 0.0
    %623 = vmatpush1.msra.mxu0 0.0
    %624 = vmatprep.subr.mxu0 0.0
    %625 = vmatpush1.msra.mxu0 0.0
    %626 = vmatprep.subr.mxu0 0.0
    %627 = vmatpush1.msra.mxu0 0.0
    %628 = vmatprep.subr.mxu0 0.0
    %629 = vmatpush1.msra.mxu0 0.0
    %630 = vmatprep.subr.mxu0 0.0
    %631 = vmatpush1.msra.mxu0 0.0
    %632 = vmatprep.subr.mxu0 0.0
    %633 = vmatpush1.msra.mxu0 0.0
    %634 = vmatprep.subr.mxu0 0.0
    %635 = vmatpush1.msra.mxu0 0.0
    %636 = vmatprep.mubr.f32.mxu0 0.0
    %637 = vmatmul.mubr.f32.gmra.mrb[0].mxu0 %v339
    %v638 = vpop.f32.mrb[0].mxu0
    %v639 = vadd.f32 0.0, %v638
    %v640 = vpop.f32.mrb[0].mxu0
    %641 = vdwg.mxu0
    %v642 = vmul.f32 %v569, 0.999995
    %v643 = vmul.f32 %v639, 0.999995
    %v644 = vmax.f32 %v642, 0.0
    %v645 = vmax.f32 %v643, 0.0
    %v646 = vadd.f32 %v644, %v419
    %v647 = vadd.f32 %v645, %v420
    %v648 = vmul.f32 %v646, 0.999995
    %v649 = vmul.f32 %v647, 0.999995
    %v650 = vmax.f32 %v648, 0.0
    %v651 = vmax.f32 %v649, 0.0
    %652 = vst [vmem:[#allocation8] sm:$0xff] %v650
    %653 = vst [vmem:[#allocation8 + $0x8] sm:$0xff] %v651
    %v654 = vlaneseq
    %v655 = vshrl.u32 %v654, 7
    %v656 = vsub.s32 2, %v655
    %v657 = vrot.slane %v178, %v656
    %658 = vmatprep.subr.mxu0 0.0
    %659 = vmatpush1.msra.mxu0 %v114
    %660 = vmatprep.subr.mxu0 0.0
    %661 = vmatpush1.msra.mxu0 %v115
    %662 = vmatprep.subr.mxu0 0.0
    %663 = vmatpush1.msra.mxu0 %v116
    %664 = vmatprep.subr.mxu0 0.0
    %665 = vmatpush1.msra.mxu0 %v117
    %666 = vmatprep.subr.mxu0 0.0
    %667 = vmatpush1.msra.mxu0 %v118
    %668 = vmatprep.subr.mxu0 0.0
    %669 = vmatpush1.msra.mxu0 %v119
    %670 = vmatprep.subr.mxu0 0.0
    %671 = vmatpush1.msra.mxu0 %v120
    %672 = vmatprep.subr.mxu0 0.0
    %673 = vmatpush1.msra.mxu0 %v121
    %674 = vmatprep.subr.mxu0 0.0
    %675 = vmatpush1.msra.mxu0 %v122
    %676 = vmatprep.subr.mxu0 0.0
    %677 = vmatpush1.msra.mxu0 %v123
    %678 = vmatprep.subr.mxu0 0.0
    %679 = vmatpush1.msra.mxu0 %v124
    %680 = vmatprep.subr.mxu0 0.0
    %681 = vmatpush1.msra.mxu0 %v125
    %682 = vmatprep.subr.mxu0 0.0
    %683 = vmatpush1.msra.mxu0 %v126
    %684 = vmatprep.subr.mxu0 0.0
    %685 = vmatpush1.msra.mxu0 %v127
    %686 = vmatprep.subr.mxu0 0.0
    %687 = vmatpush1.msra.mxu0 %v128
    %688 = vmatprep.subr.mxu0 0.0
    %689 = vmatpush1.msra.mxu0 %v129
    %690 = vmatprep.subr.mxu0 0.0
    %691 = vmatpush1.msra.mxu0 0.0
    %692 = vmatprep.subr.mxu0 0.0
    %693 = vmatpush1.msra.mxu0 0.0
    %694 = vmatprep.subr.mxu0 0.0
    %695 = vmatpush1.msra.mxu0 0.0
    %696 = vmatprep.subr.mxu0 0.0
    %697 = vmatpush1.msra.mxu0 0.0
    %698 = vmatprep.subr.mxu0 0.0
    %699 = vmatpush1.msra.mxu0 0.0
    %700 = vmatprep.subr.mxu0 0.0
    %701 = vmatpush1.msra.mxu0 0.0
    %702 = vmatprep.subr.mxu0 0.0
    %703 = vmatpush1.msra.mxu0 0.0
    %704 = vmatprep.subr.mxu0 0.0
    %705 = vmatpush1.msra.mxu0 0.0
    %706 = vmatprep.subr.mxu0 0.0
    %707 = vmatpush1.msra.mxu0 0.0
    %708 = vmatprep.subr.mxu0 0.0
    %709 = vmatpush1.msra.mxu0 0.0
    %710 = vmatprep.subr.mxu0 0.0
    %711 = vmatpush1.msra.mxu0 0.0
    %712 = vmatprep.subr.mxu0 0.0
    %713 = vmatpush1.msra.mxu0 0.0
    %714 = vmatprep.subr.mxu0 0.0
    %715 = vmatpush1.msra.mxu0 0.0
    %716 = vmatprep.subr.mxu0 0.0
    %717 = vmatpush1.msra.mxu0 0.0
    %718 = vmatprep.subr.mxu0 0.0
    %719 = vmatpush1.msra.mxu0 0.0
    %720 = vmatprep.subr.mxu0 0.0
    %721 = vmatpush1.msra.mxu0 0.0
    %722 = vmatprep.mubr.f32.mxu0 0.0
    %723 = vmatmul.mubr.f32.gmra.mrb[0].mxu0 %v650
    %v724 = vpop.f32.mrb[0].mxu0
    %v725 = vadd.f32 %v657, %v724
    %v726 = vpop.f32.mrb[0].mxu0
    %727 = vmatprep.mubr.f32.mxu0 0.0
    %728 = vmatmul.mubr.f32.gmra.mrb[0].mxu0 %v651
    %v729 = vpop.f32.mrb[0].mxu0
    %v730 = vadd.f32 %v657, %v729
    %v731 = vpop.f32.mrb[0].mxu0
    %732 = vdwg.mxu0
    %v733 = vrot.slane %v725, 4
    %v734 = vadd.f32 %v725, %v733
    %v735 = vrot.slane %v734, 2
    %v736 = vadd.f32 %v734, %v735
    %v737 = vrot.slane %v736, 1
    %v738 = vadd.f32 %v736, %v737
    %v739 = vrcp.pop 8.0
    %v740 = vmul.f32 %v738, %v739
    %v741 = vrot.slane %v730, 4
    %v742 = vadd.f32 %v730, %v741
    %v743 = vrot.slane %v742, 2
    %v744 = vadd.f32 %v742, %v743
    %v745 = vrot.slane %v744, 1
    %v746 = vadd.f32 %v744, %v745
    %v747 = vmul.f32 %v746, %v739
    %vm748 = vcmask 1040384
    %v749 = vsel %vm748, %v740, %v747
    %v750 = vlaneseq
    %v751 = vshrl.u32 %v750, 7
    %v752 = vsub.s32 3, %v751
    %v753 = vrot.slane %v178, %v752
    %754 = vmatprep.subr.mxu0 0.0
    %755 = vmatpush1.msra.mxu0 %v130
    %756 = vmatprep.subr.mxu0 0.0
    %757 = vmatpush1.msra.mxu0 %v131
    %758 = vmatprep.subr.mxu0 0.0
    %759 = vmatpush1.msra.mxu0 %v132
    %760 = vmatprep.subr.mxu0 0.0
    %761 = vmatpush1.msra.mxu0 %v133
    %762 = vmatprep.subr.mxu0 0.0
    %763 = vmatpush1.msra.mxu0 %v134
    %764 = vmatprep.subr.mxu0 0.0
    %765 = vmatpush1.msra.mxu0 %v135
    %766 = vmatprep.subr.mxu0 0.0
    %767 = vmatpush1.msra.mxu0 %v136
    %768 = vmatprep.subr.mxu0 0.0
    %769 = vmatpush1.msra.mxu0 %v137
    %770 = vmatprep.subr.mxu0 0.0
    %771 = vmatpush1.msra.mxu0 %v138
    %772 = vmatprep.subr.mxu0 0.0
    %773 = vmatpush1.msra.mxu0 %v139
    %774 = vmatprep.subr.mxu0 0.0
    %775 = vmatpush1.msra.mxu0 %v140
    %776 = vmatprep.subr.mxu0 0.0
    %777 = vmatpush1.msra.mxu0 %v141
    %778 = vmatprep.subr.mxu0 0.0
    %779 = vmatpush1.msra.mxu0 %v142
    %780 = vmatprep.subr.mxu0 0.0
    %781 = vmatpush1.msra.mxu0 %v143
    %782 = vmatprep.subr.mxu0 0.0
    %783 = vmatpush1.msra.mxu0 %v144
    %784 = vmatprep.subr.mxu0 0.0
    %785 = vmatpush1.msra.mxu0 %v145
    %786 = vmatprep.subr.mxu0 0.0
    %787 = vmatpush1.msra.mxu0 0.0
    %788 = vmatprep.subr.mxu0 0.0
    %789 = vmatpush1.msra.mxu0 0.0
    %790 = vmatprep.subr.mxu0 0.0
    %791 = vmatpush1.msra.mxu0 0.0
    %792 = vmatprep.subr.mxu0 0.0
    %793 = vmatpush1.msra.mxu0 0.0
    %794 = vmatprep.subr.mxu0 0.0
    %795 = vmatpush1.msra.mxu0 0.0
    %796 = vmatprep.subr.mxu0 0.0
    %797 = vmatpush1.msra.mxu0 0.0
    %798 = vmatprep.subr.mxu0 0.0
    %799 = vmatpush1.msra.mxu0 0.0
    %800 = vmatprep.subr.mxu0 0.0
    %801 = vmatpush1.msra.mxu0 0.0
    %802 = vmatprep.subr.mxu0 0.0
    %803 = vmatpush1.msra.mxu0 0.0
    %804 = vmatprep.subr.mxu0 0.0
    %805 = vmatpush1.msra.mxu0 0.0
    %806 = vmatprep.subr.mxu0 0.0
    %807 = vmatpush1.msra.mxu0 0.0
    %808 = vmatprep.subr.mxu0 0.0
    %809 = vmatpush1.msra.mxu0 0.0
    %810 = vmatprep.subr.mxu0 0.0
    %811 = vmatpush1.msra.mxu0 0.0
    %812 = vmatprep.subr.mxu0 0.0
    %813 = vmatpush1.msra.mxu0 0.0
    %814 = vmatprep.subr.mxu0 0.0
    %815 = vmatpush1.msra.mxu0 0.0
    %816 = vmatprep.subr.mxu0 0.0
    %817 = vmatpush1.msra.mxu0 0.0
    %818 = vmatprep.mubr.f32.mxu0 0.0
    %819 = vmatmul.mubr.f32.gmra.mrb[0].mxu0 %v749
    %v820 = vpop.f32.mrb[0].mxu0
    %v821 = vadd.f32 %v753, %v820
    %v822 = vpop.f32.mrb[0].mxu0
    %823 = vdwg.mxu0
    %v824 = vmax.f32 %v821, 0.0
    %v825 = vmul.f32 %v824, 0.999995
    %v826 = vlaneseq
    %v827 = vshrl.u32 %v826, 7
    %v828 = vsub.s32 4, %v827
    %v829 = vrot.slane %v178, %v828
    %830 = vmatprep.subr.mxu0 0.0
    %831 = vmatpush1.msra.mxu0 %v146
    %832 = vmatprep.subr.mxu0 0.0
    %833 = vmatpush1.msra.mxu0 %v147
    %834 = vmatprep.subr.mxu0 0.0
    %835 = vmatpush1.msra.mxu0 %v148
    %836 = vmatprep.subr.mxu0 0.0
    %837 = vmatpush1.msra.mxu0 %v149
    %838 = vmatprep.subr.mxu0 0.0
    %839 = vmatpush1.msra.mxu0 %v150
    %840 = vmatprep.subr.mxu0 0.0
    %841 = vmatpush1.msra.mxu0 %v151
    %842 = vmatprep.subr.mxu0 0.0
    %843 = vmatpush1.msra.mxu0 %v152
    %844 = vmatprep.subr.mxu0 0.0
    %845 = vmatpush1.msra.mxu0 %v153
    %846 = vmatprep.subr.mxu0 0.0
    %847 = vmatpush1.msra.mxu0 %v154
    %848 = vmatprep.subr.mxu0 0.0
    %849 = vmatpush1.msra.mxu0 %v155
    %850 = vmatprep.subr.mxu0 0.0
    %851 = vmatpush1.msra.mxu0 %v156
    %852 = vmatprep.subr.mxu0 0.0
    %853 = vmatpush1.msra.mxu0 %v157
    %854 = vmatprep.subr.mxu0 0.0
    %855 = vmatpush1.msra.mxu0 %v158
    %856 = vmatprep.subr.mxu0 0.0
    %857 = vmatpush1.msra.mxu0 %v159
    %858 = vmatprep.subr.mxu0 0.0
    %859 = vmatpush1.msra.mxu0 %v160
    %860 = vmatprep.subr.mxu0 0.0
    %861 = vmatpush1.msra.mxu0 %v161
    %862 = vmatprep.subr.mxu0 0.0
    %863 = vmatpush1.msra.mxu0 0.0
    %864 = vmatprep.subr.mxu0 0.0
    %865 = vmatpush1.msra.mxu0 0.0
    %866 = vmatprep.subr.mxu0 0.0
    %867 = vmatpush1.msra.mxu0 0.0
    %868 = vmatprep.subr.mxu0 0.0
    %869 = vmatpush1.msra.mxu0 0.0
    %870 = vmatprep.subr.mxu0 0.0
    %871 = vmatpush1.msra.mxu0 0.0
    %872 = vmatprep.subr.mxu0 0.0
    %873 = vmatpush1.msra.mxu0 0.0
    %874 = vmatprep.subr.mxu0 0.0
    %875 = vmatpush1.msra.mxu0 0.0
    %876 = vmatprep.subr.mxu0 0.0
    %877 = vmatpush1.msra.mxu0 0.0
    %878 = vmatprep.subr.mxu0 0.0
    %879 = vmatpush1.msra.mxu0 0.0
    %880 = vmatprep.subr.mxu0 0.0
    %881 = vmatpush1.msra.mxu0 0.0
    %882 = vmatprep.subr.mxu0 0.0
    %883 = vmatpush1.msra.mxu0 0.0
    %884 = vmatprep.subr.mxu0 0.0
    %885 = vmatpush1.msra.mxu0 0.0
    %886 = vmatprep.subr.mxu0 0.0
    %887 = vmatpush1.msra.mxu0 0.0
    %888 = vmatprep.subr.mxu0 0.0
    %889 = vmatpush1.msra.mxu0 0.0
    %890 = vmatprep.subr.mxu0 0.0
    %891 = vmatpush1.msra.mxu0 0.0
    %892 = vmatprep.subr.mxu0 0.0
    %893 = vmatpush1.msra.mxu0 0.0
    %894 = vmatprep.mubr.f32.mxu0 0.0
    %895 = vmatmul.mubr.f32.gmra.mrb[0].mxu0 %v825
    %v896 = vpop.f32.mrb[0].mxu0
    %v897 = vadd.f32 %v829, %v896
    %v898 = vpop.f32.mrb[0].mxu0
    %899 = vdwg.mxu0
    %v900 = vmax.f32 %v897, 0.0
    %v901 = vmul.f32 %v900, 0.999995
    %v902 = vlaneseq
    %v903 = vshrl.u32 %v902, 7
    %v904 = vsub.s32 5, %v903
    %v905 = vrot.slane %v178, %v904
    %906 = vmatprep.subr.mxu0 0.0
    %907 = vmatpush1.msra.mxu0 %v162
    %908 = vmatprep.subr.mxu0 0.0
    %909 = vmatpush1.msra.mxu0 %v163
    %910 = vmatprep.subr.mxu0 0.0
    %911 = vmatpush1.msra.mxu0 %v164
    %912 = vmatprep.subr.mxu0 0.0
    %913 = vmatpush1.msra.mxu0 %v165
    %914 = vmatprep.subr.mxu0 0.0
    %915 = vmatpush1.msra.mxu0 %v166
    %916 = vmatprep.subr.mxu0 0.0
    %917 = vmatpush1.msra.mxu0 %v167
    %918 = vmatprep.subr.mxu0 0.0
    %919 = vmatpush1.msra.mxu0 %v168
    %920 = vmatprep.subr.mxu0 0.0
    %921 = vmatpush1.msra.mxu0 %v169
    %922 = vmatprep.subr.mxu0 0.0
    %923 = vmatpush1.msra.mxu0 %v170
    %924 = vmatprep.subr.mxu0 0.0
    %925 = vmatpush1.msra.mxu0 %v171
    %926 = vmatprep.subr.mxu0 0.0
    %927 = vmatpush1.msra.mxu0 %v172
    %928 = vmatprep.subr.mxu0 0.0
    %929 = vmatpush1.msra.mxu0 %v173
    %930 = vmatprep.subr.mxu0 0.0
    %931 = vmatpush1.msra.mxu0 %v174
    %932 = vmatprep.subr.mxu0 0.0
    %933 = vmatpush1.msra.mxu0 %v175
    %934 = vmatprep.subr.mxu0 0.0
    %935 = vmatpush1.msra.mxu0 %v176
    %936 = vmatprep.subr.mxu0 0.0
    %937 = vmatpush1.msra.mxu0 %v177
    %938 = vmatprep.subr.mxu0 0.0
    %939 = vmatpush1.msra.mxu0 0.0
    %940 = vmatprep.subr.mxu0 0.0
    %941 = vmatpush1.msra.mxu0 0.0
    %942 = vmatprep.subr.mxu0 0.0
    %943 = vmatpush1.msra.mxu0 0.0
    %944 = vmatprep.subr.mxu0 0.0
    %945 = vmatpush1.msra.mxu0 0.0
    %946 = vmatprep.subr.mxu0 0.0
    %947 = vmatpush1.msra.mxu0 0.0
    %948 = vmatprep.subr.mxu0 0.0
    %949 = vmatpush1.msra.mxu0 0.0
    %950 = vmatprep.subr.mxu0 0.0
    %951 = vmatpush1.msra.mxu0 0.0
    %952 = vmatprep.subr.mxu0 0.0
    %953 = vmatpush1.msra.mxu0 0.0
    %954 = vmatprep.subr.mxu0 0.0
    %955 = vmatpush1.msra.mxu0 0.0
    %956 = vmatprep.subr.mxu0 0.0
    %957 = vmatpush1.msra.mxu0 0.0
    %958 = vmatprep.subr.mxu0 0.0
    %959 = vmatpush1.msra.mxu0 0.0
    %960 = vmatprep.subr.mxu0 0.0
    %961 = vmatpush1.msra.mxu0 0.0
    %962 = vmatprep.subr.mxu0 0.0
    %963 = vmatpush1.msra.mxu0 0.0
    %964 = vmatprep.subr.mxu0 0.0
    %965 = vmatpush1.msra.mxu0 0.0
    %966 = vmatprep.subr.mxu0 0.0
    %967 = vmatpush1.msra.mxu0 0.0
    %968 = vmatprep.subr.mxu0 0.0
    %969 = vmatpush1.msra.mxu0 0.0
    %970 = vmatprep.mubr.f32.mxu0 0.0
    %971 = vmatmul.mubr.f32.gmra.mrb[0].mxu0 %v901
    %v972 = vpop.f32.mrb[0].mxu0
    %v973 = vadd.f32 %v905, %v972
    %v974 = vpop.f32.mrb[0].mxu0
    %975 = vdwg.mxu0
    %976 = vst [vmem:[#allocation9] sm:$0x3] %v973
    // Predicated region
    $region30: #{tpu_custom_call.1} parent=1 // pred_check
      _
    $region31: #{tpu_custom_call.1} parent=1 // pred_check_branch
      %978 = sbr.rel (0) target = $region33
    $region32: #{tpu_custom_call.1} parent=1 // pred_region
      %s980 = ssub.s32 256, 256
      %981 = vsyncadd [#allocation4], %s980
      %s982 = sshll.u32 [#allocation8], 4
      %s983 = int_to_ptr.vmem [resolvable:$true] %s982
      %988 = dma.vmem_to_hbm [thread:$0]  %s983, 256, %s4, [#allocation4], 128, 128, 8
    $region33: #{tpu_custom_call.1} parent=1 // pred_fallthru
      _
    // Predicated region
    $region34: #{tpu_custom_call.1} parent=1 // pred_check
      _
    $region35: #{tpu_custom_call.1} parent=1 // pred_check_branch
      %990 = sbr.rel (0) target = $region37
    $region36: #{tpu_custom_call.1} parent=1 // pred_region
      %s992 = ssub.s32 32, 32
      %993 = vsyncadd [#allocation10], %s992
      %s995 = sshll.u32 [#allocation9], 4
      %s996 = int_to_ptr.vmem [resolvable:$true] %s995
      %998 = dma.vmem_to_hbm [thread:$0]  %s996, 32, %s5, [#allocation10]
    $region37: #{tpu_custom_call.1} parent=1 // pred_fallthru
      _
    // Predicated region
    $region38: #{tpu_custom_call.1} parent=1 // pred_check
      _
    $region39: #{tpu_custom_call.1} parent=1 // pred_check_branch
      %1000 = sbr.rel (0) target = $region41
    $region40: #{tpu_custom_call.1} parent=1 // pred_region
      %1001 = dma.done [#allocation4], 256
    $region41: #{tpu_custom_call.1} parent=1 // pred_fallthru
      _
    // Predicated region
    $region42: #{tpu_custom_call.1} parent=1 // pred_check
      _
    $region43: #{tpu_custom_call.1} parent=1 // pred_check_branch
      %1003 = sbr.rel (0) target = $region45
    $region44: #{tpu_custom_call.1} parent=1 // pred_region
      %1004 = dma.done [#allocation10], 32
    $region45: #{tpu_custom_call.1} parent=1 // pred_fallthru
      _
    %1005 = vsyncpa [#allocation3], 1
    %1006 = vsyncpa [#allocation6], 1
    %1007 = vsyncpa [#allocation4], 1
    %1008 = vsyncpa [#allocation10], 1

</llo_original>
